<compile_context>
chip_gen: v7x
topology: tpu7x:2x2x1
jax: 0.10.0
libtpu: 0.0.40
codegen_flags: <defaults>
</compile_context>

<pallas_src>
import functools

import numpy as np
import jax
import jax.numpy as jnp
from jax import lax
from jax.experimental import pallas as pl
from jax.experimental.pallas import tpu as pltpu


def _roll(z, shift, axis):
    """Rotate z along `axis`.  Uses the XLU rotate (free slot) when the layout
    is register aligned; falls back to slice+concat for tiny demo shapes."""
    axis = axis % z.ndim
    aligned = (z.shape[-1] % 128 == 0) and (z.ndim < 2 or z.shape[-2] % 8 == 0)
    if aligned and axis >= z.ndim - 2:
        return pltpu.roll(z, shift % z.shape[axis], axis)
    return jnp.roll(z, shift, axis=axis)


def _rope_tables(S, W, theta_full):
    """Interleaved-RoPE tables: cos (repeated per pair) and a signed sin table
    (even lanes carry -sin, odd lanes carry +sin).  Applied in-kernel as:
        rope(z) = z * cos + select(lane_even, roll(z,-1), roll(z,+1)) * sin_signed
    theta_full is the module-wide theta (built for d_model, sliced for narrower
    inputs such as the key), matching the torch module."""
    ang = jnp.arange(S, dtype=jnp.float32)[:, None] * theta_full[None, :W // 2]
    cos = jnp.repeat(jnp.cos(ang), 2, axis=-1)                      # (S, W)
    sin = jnp.sin(ang)
    sin_signed = jnp.stack([-sin, sin], axis=-1).reshape(S, W)      # [-s,+s,...]
    return cos, sin_signed


def _kv_kernel(x_ref, wkT_ref, wv_ref, coskt_ref, sinkt_ref, kt_ref, v_ref):
    """Per-batch K/V projection; K is RoPE'd and stored transposed (dk, S)."""
    f32, bf16 = jnp.float32, jnp.bfloat16
    xf = x_ref[0]                                                     # (S, D) bf16
    v_ref[0] = jnp.dot(xf, wv_ref[...], preferred_element_type=f32).astype(bf16)
    # K^T directly: (dk, D) x (S, D) contracting D  ->  (dk, S)
    kt = lax.dot_general(wkT_ref[...], xf, (((1,), (1,)), ((), ())),
                         preferred_element_type=f32)                  # (dk, S) f32
    row = lax.broadcasted_iota(jnp.int32, kt.shape, 0)                # feature idx
    k_rot = jnp.where((row & 1) == 0, _roll(kt, -1, 0), _roll(kt, 1, 0))
    kt_ref[0] = (kt * coskt_ref[...] + k_rot * sinkt_ref[...]).astype(bf16)


def _attn_kernel(x_ref, kt_ref, v_ref, wq_ref, wo_ref, bo_ref,
                 cosq_ref, sinq_ref, mem_ref, memnorm_ref, w_ref, omw_ref,
                 out_ref, fused_scr, *, n_head, n_query, d_head, dk):
    f32, bf16 = jnp.float32, jnp.bfloat16
    nq, nh, dh = n_query, n_head, d_head

    # ---- Q projection (raw q stays f32 + unscaled for the memory path) ----
    x_t = x_ref[0]                                                    # (tq, D) bf16
    q = jnp.dot(x_t, wq_ref[...], preferred_element_type=f32)         # (tq, D) f32

    # ---- RoPE(Q); 1/sqrt(d_head) is pre-folded into cos/sin tables ----
    lane = lax.broadcasted_iota(jnp.int32, q.shape, 1)
    q_rot = jnp.where((lane & 1) == 0, _roll(q, -1, -1), _roll(q, 1, -1))
    q_rope = (q * cosq_ref[...] + q_rot * sinq_ref[...]).astype(bf16)

    kt = kt_ref[0]                                                    # (dk, S) bf16
    v = v_ref[0]                                                      # (S, dk) bf16

    # ---- grouped-query SDPA: per-(head, group) matmuls straight into the
    #      fused scratch; sigmoid mixing (1-w) folded into the writeback ----
    for h in range(nh):
        kh = kt[h * dh:(h + 1) * dh, :]                               # (dh, S)
        vh = v[:, h * dh:(h + 1) * dh]                                # (S, dh)
        for i in range(nq):
            g = h * nq + i
            qg = q_rope[:, g * dh:(g + 1) * dh]                       # (tq, dh)
            s = jnp.dot(qg, kh, preferred_element_type=f32)           # (tq, S)
            s = s - jnp.max(s, axis=-1, keepdims=True)
            e = jnp.exp(s.astype(bf16))                               # bf16 EUP exp
            inv = pl.reciprocal(jnp.sum(e.astype(f32), axis=-1, keepdims=True),
                                approx=True)
            p = e * inv.astype(bf16)                                  # (tq, S) bf16
            att = jnp.dot(p, vh, preferred_element_type=f32)          # (tq, dh) f32
            fused_scr[:, g * dh:(g + 1) * dh] = (
                att * omw_ref[:, g * dh:(g + 1) * dh])

    # ---- infini-memory read (Eq. 7) on RAW (un-rotated, unscaled) q ----
    # elu(q) + 1 in a single pass over the full (tq, D) q
    sigma = jnp.where(q > 0, q + 1.0, jnp.exp(jnp.minimum(q, 0.0)))
    for qp in range(nq):
        sg = sigma[:, qp * dk:(qp + 1) * dk]                          # (tq, dk) f32
        num = jnp.dot(sg.astype(bf16), mem_ref[...],
                      preferred_element_type=f32)                     # (tq, dk)
        den = jnp.sum(sg * memnorm_ref[...], axis=-1, keepdims=True) + 1e-8
        amem = num * pl.reciprocal(den, approx=True)
        fused_scr[:, qp * dk:(qp + 1) * dk] += (
            amem * w_ref[:, qp * dk:(qp + 1) * dk])

    # ---- output projection ----
    out = jnp.dot(fused_scr[...].astype(bf16), wo_ref[...],
                  preferred_element_type=f32) + bo_ref[...]
    out_ref[0] = out


def infini_gqa_forward(x, params, *, n_head, n_query, tq=None):
    B, S, D = x.shape
    dk = params["wk"].shape[1]
    dh = dk // n_head
    nq = n_query
    assert D == nq * dk and dk == n_head * dh
    scale = 1.0 / float(np.sqrt(np.float32(dh)))
    bf = jnp.bfloat16

    # query-tile size (production: sweep {256, 512}; cap ~256 on v7x)
    if tq is None:
        tq = S
        for t in (512, 256, 128, 64, 32, 16, 8):
            if S % t == 0:
                tq = t
                break
    assert S % tq == 0
    nqt = S // tq

    # module-wide theta (built for d_model; sliced for the narrower key input)
    d2 = D // 2
    theta = jnp.asarray(10000.0, jnp.float32) ** (
        -jnp.arange(d2, dtype=jnp.float32) / d2)
    cos_q, sin_q = _rope_tables(S, D, theta)
    cos_k, sin_k = _rope_tables(S, dk, theta)
    # fold the attention scale into the Q tables only
    cos_q = (cos_q * scale).astype(bf)
    sin_q = (sin_q * scale).astype(bf)
    # K is produced / consumed transposed: ship its tables as (dk, S)
    cos_kt = cos_k.T.astype(bf)
    sin_kt = sin_k.T.astype(bf)

    x_bf = x.astype(bf)
    wq = params["wq"].astype(bf)
    wkT = params["wk"].T.astype(bf)                                   # (dk, D)
    wv = params["wv"].astype(bf)
    wo = params["wo"].astype(bf)
    bo = params["bo"].reshape(1, D).astype(jnp.float32)
    mem = params["memory"].astype(bf)
    mem_norm_row = params["memory_norm"].reshape(1, dk).astype(jnp.float32)
    # sigmoid(memory_weight) broadcast per channel: w_row[gg*dh + c] = w[gg]
    w_row = jnp.repeat(jax.nn.sigmoid(params["memory_weight"]).astype(jnp.float32),
                       dh)[None, :]                                   # (1, D)
    omw_row = 1.0 - w_row

    cparams_kv = pltpu.CompilerParams(
        dimension_semantics=("parallel",),
        vmem_limit_bytes=48 * 1024 * 1024)
    cparams_attn = pltpu.CompilerParams(
        dimension_semantics=("parallel", "parallel"),
        vmem_limit_bytes=48 * 1024 * 1024)

    # -------- pass 1: K/V projection + RoPE(K), once per batch element --------
    k_t, v_p = pl.pallas_call(
        _kv_kernel,
        out_shape=(jax.ShapeDtypeStruct((B, dk, S), bf),
                   jax.ShapeDtypeStruct((B, S, dk), bf)),
        grid=(B,),
        in_specs=[
            pl.BlockSpec((1, S, D), lambda b: (b, 0, 0)),             # x
            pl.BlockSpec((dk, D), lambda b: (0, 0)),                  # wk^T
            pl.BlockSpec((D, dk), lambda b: (0, 0)),                  # wv
            pl.BlockSpec((dk, S), lambda b: (0, 0)),                  # cos_k^T
            pl.BlockSpec((dk, S), lambda b: (0, 0)),                  # sin_k^T
        ],
        out_specs=(pl.BlockSpec((1, dk, S), lambda b: (b, 0, 0)),
                   pl.BlockSpec((1, S, dk), lambda b: (b, 0, 0))),
        compiler_params=cparams_kv,
    )(x_bf, wkT, wv, cos_kt, sin_kt)

    # -------- pass 2: attention + infini-memory + mixing + output proj --------
    kernel = functools.partial(_attn_kernel, n_head=n_head, n_query=nq,
                               d_head=dh, dk=dk)

    def const(shape):
        return pl.BlockSpec(shape, lambda b, t: (0,) * len(shape))

    return pl.pallas_call(
        kernel,
        out_shape=jax.ShapeDtypeStruct((B, S, D), jnp.float32),
        grid=(B, nqt),
        in_specs=[
            pl.BlockSpec((1, tq, D), lambda b, t: (b, t, 0)),         # x tile
            pl.BlockSpec((1, dk, S), lambda b, t: (b, 0, 0)),         # K^T (rope'd)
            pl.BlockSpec((1, S, dk), lambda b, t: (b, 0, 0)),         # V
            const((D, D)),                                            # wq
            const((D, D)),                                            # wo
            const((1, D)),                                            # bo
            pl.BlockSpec((tq, D), lambda b, t: (t, 0)),               # cos_q (scaled)
            pl.BlockSpec((tq, D), lambda b, t: (t, 0)),               # sin_q (scaled)
            const((dk, dk)),                                          # memory
            const((1, dk)),                                           # memory_norm
            const((1, D)),                                            # w
            const((1, D)),                                            # 1 - w
        ],
        out_specs=pl.BlockSpec((1, tq, D), lambda b, t: (b, t, 0)),
        scratch_shapes=[pltpu.VMEM((tq, D), jnp.float32)],            # fused A
        compiler_params=cparams_attn,
    )(x_bf, k_t, v_p, wq, wo, bo, cos_q, sin_q, mem, mem_norm_row,
      w_row, omw_row)


# ----------------------- pure-JAX reference (torch port) -----------------------
def _ref_rope(z, theta):
    S, Dz = z.shape[-2], z.shape[-1]
    d2 = Dz // 2
    pos = jnp.arange(S, dtype=jnp.float32)[:, None]
    ang = pos * theta[None, :d2]
    cos, sin = jnp.cos(ang), jnp.sin(ang)
    ze, zo = z[..., 0::2], z[..., 1::2]
    oe = ze * cos - zo * sin
    oo = zo * cos + ze * sin
    return jnp.stack([oe, oo], axis=-1).reshape(z.shape)


def ref_forward(x, params, *, n_head, n_query):
    B, S, D = x.shape
    dk = params["wk"].shape[1]
    dh = dk // n_head
    nq, nh = n_query, n_head
    hp = jax.lax.Precision.HIGHEST
    d2 = D // 2
    theta = jnp.asarray(10000.0, jnp.float32) ** (
        -jnp.arange(d2, dtype=jnp.float32) / d2)

    q = jnp.einsum("bsd,de->bse", x, params["wq"], precision=hp)
    k = jnp.einsum("bsd,de->bse", x, params["wk"], precision=hp)
    v = jnp.einsum("bsd,de->bse", x, params["wv"], precision=hp)
    q_r = _ref_rope(q, theta)
    k_r = _ref_rope(k, theta)

    key_t = k_r.reshape(B, S, nh, dh).transpose(0, 2, 3, 1)
    query_t = q_r.reshape(B, S, nh * nq, dh).transpose(0, 2, 1, 3).reshape(
        B, nh, nq * S, dh)
    value_t = v.reshape(B, S, nh, dh).transpose(0, 2, 1, 3)
    scale = 1.0 / np.sqrt(np.float32(dh))
    scores = jnp.matmul(query_t, key_t, precision=hp) * scale
    probs = jax.nn.softmax(scores.reshape(B, nh * nq, S, S), axis=-1)
    att = jnp.matmul(probs.reshape(B, nh, nq * S, S), value_t, precision=hp)
    att = att.reshape(B, nh * nq, S, dh).transpose(0, 2, 1, 3)        # (B,S,G,dh)

    sigma_q = jax.nn.elu(q.reshape(B, S, nq, nh * dh)) + 1.0
    num = jnp.matmul(sigma_q, params["memory"], precision=hp)
    den = jnp.matmul(sigma_q, params["memory_norm"], precision=hp)
    a_mem = (num / (den + 1e-8)).reshape(B, S, nq * nh, dh)

    w = jax.nn.sigmoid(params["memory_weight"]).reshape(1, 1, -1, 1)
    fused = att * (1.0 - w) + a_mem * w
    return (jnp.einsum("bsd,de->bse", fused.reshape(B, S, D), params["wo"],
                       precision=hp)
            + params["bo"][None, None, :])


if __name__ == "__main__":
    B, S = 2, 16
    d_model, n_head, n_query = 32, 2, 2
    d_head = d_model // (n_head * n_query)      # 8
    dk = d_head * n_head                        # 16

    key = jax.random.PRNGKey(0)
    ks = jax.random.split(key, 9)
    # Deterministic synthetic parameters; memory/memory_norm are the module's
    # buffers (zeros/ones at init) but are initialized non-trivially here so the
    # infini-memory path is actually exercised.
    params = {
        "wq": 0.08 * jax.random.normal(ks[0], (d_model, d_model), jnp.float32),
        "wk": 0.08 * jax.random.normal(ks[1], (d_model, dk), jnp.float32),
        "wv": 0.08 * jax.random.normal(ks[2], (d_model, dk), jnp.float32),
        "wo": 0.08 * jax.random.normal(ks[3], (d_model, d_model), jnp.float32),
        "bo": 0.05 * jax.random.normal(ks[4], (d_model,), jnp.float32),
        "memory": 0.1 * jax.random.normal(ks[5], (dk, dk), jnp.float32),
        "memory_norm": 1.0 + 0.1 * jnp.abs(
            jax.random.normal(ks[6], (dk, 1), jnp.float32)),
        "memory_weight": 0.1 * jax.random.normal(
            ks[7], (n_head * n_query,), jnp.float32),
    }
    x = jax.random.normal(ks[8], (B, S, d_model), jnp.float32)

    # tq=8 -> two query tiles per batch element, exercising the tiled-x path.
    out = infini_gqa_forward(x, params, n_head=n_head, n_query=n_query, tq=8)
    out = jax.block_until_ready(out)

    ref = ref_forward(x, params, n_head=n_head, n_query=n_query)
    np.testing.assert_allclose(np.asarray(out), np.asarray(ref),
                               rtol=2e-2, atol=2e-2)
    print("KERNEL_OK")
</pallas_src>

<mosaic_0001>
module attributes {stable_mosaic.version = 11 : i64} {
  func.func @_kv_kernel(%arg0: i32, %arg1: memref<1x16x32xbf16, #tpu.memory_space<vmem>>, %arg2: memref<16x32xbf16, #tpu.memory_space<vmem>>, %arg3: memref<32x16xbf16, #tpu.memory_space<vmem>>, %arg4: memref<16x16xbf16, #tpu.memory_space<vmem>>, %arg5: memref<16x16xbf16, #tpu.memory_space<vmem>>, %arg6: memref<1x16x16xbf16, #tpu.memory_space<vmem>>, %arg7: memref<1x16x16xbf16, #tpu.memory_space<vmem>>) attributes {dimension_semantics = [#tpu.dimension_semantics<parallel>], iteration_bounds = array<i64: 2>, scalar_prefetch = 0 : i64, scratch_operands = 0 : i64, tpu.core_type = #tpu.core_type<tc>, window_params = [{transform_indices = @transform_0, window_bounds = array<i64: 1, 16, 32>}, {pipeline_mode = #tpu.pipeline_mode<synchronous>, transform_indices = @transform_1, window_bounds = array<i64: 16, 32>}, {pipeline_mode = #tpu.pipeline_mode<synchronous>, transform_indices = @transform_2, window_bounds = array<i64: 32, 16>}, {pipeline_mode = #tpu.pipeline_mode<synchronous>, transform_indices = @transform_3, window_bounds = array<i64: 16, 16>}, {pipeline_mode = #tpu.pipeline_mode<synchronous>, transform_indices = @transform_4, window_bounds = array<i64: 16, 16>}, {transform_indices = @transform_5, window_bounds = array<i64: 1, 16, 16>}, {transform_indices = @transform_6, window_bounds = array<i64: 1, 16, 16>}]} {
    %c0 = arith.constant 0 : index
    %c0_0 = arith.constant 0 : index
    %c0_1 = arith.constant 0 : index
    %0 = vector.load %arg1[%c0, %c0_0, %c0_1] : memref<1x16x32xbf16, #tpu.memory_space<vmem>>, vector<1x16x32xbf16>
    %1 = vector.shape_cast %0 : vector<1x16x32xbf16> to vector<16x32xbf16>
    %c0_2 = arith.constant 0 : index
    %c0_3 = arith.constant 0 : index
    %2 = vector.load %arg3[%c0_2, %c0_3] : memref<32x16xbf16, #tpu.memory_space<vmem>>, vector<32x16xbf16>
    %cst = arith.constant dense<0.000000e+00> : vector<16x16xf32>
    %3 = tpu.matmul %1, %2, %cst {dimension_numbers = #tpu.dot_dimension_numbers<[1], [0], [0], [1], [0, 0, 1, 1], [], []>} : vector<16x32xbf16>, vector<32x16xbf16>, vector<16x16xf32> -> vector<16x16xf32>
    %4 = arith.truncf %3 : vector<16x16xf32> to vector<16x16xbf16>
    %c0_4 = arith.constant 0 : index
    %c0_5 = arith.constant 0 : index
    %c0_6 = arith.constant 0 : index
    %5 = vector.load %arg7[%c0_4, %c0_5, %c0_6] : memref<1x16x16xbf16, #tpu.memory_space<vmem>>, vector<1x16x16xbf16>
    %6 = vector.shape_cast %5 : vector<1x16x16xbf16> to vector<16x16xbf16>
    %7 = vector.shape_cast %4 : vector<16x16xbf16> to vector<1x16x16xbf16>
    tpu.vector_store %arg7[%c0_4, %c0_5, %c0_6], %7 {strides = array<i32>} : memref<1x16x16xbf16, #tpu.memory_space<vmem>>, vector<1x16x16xbf16>,
    %c0_7 = arith.constant 0 : index
    %c0_8 = arith.constant 0 : index
    %8 = vector.load %arg2[%c0_7, %c0_8] : memref<16x32xbf16, #tpu.memory_space<vmem>>, vector<16x32xbf16>
    %cst_9 = arith.constant dense<0.000000e+00> : vector<16x16xf32>
    %9 = tpu.matmul %8, %1, %cst_9 {dimension_numbers = #tpu.dot_dimension_numbers<[1], [1], [0], [0], [0, 0, 1, 0], [], []>} : vector<16x32xbf16>, vector<16x32xbf16>, vector<16x16xf32> -> vector<16x16xf32>
    %10 = tpu.iota {dimensions = array<i32: 0>} : vector<16x16xi32>
    %c1_i32 = arith.constant 1 : i32
    %11 = vector.broadcast %c1_i32 : i32 to vector<16x16xi32>
    %12 = arith.andi %10, %11 : vector<16x16xi32>
    %c0_i32 = arith.constant 0 : i32
    %13 = vector.broadcast %c0_i32 : i32 to vector<16x16xi32>
    %14 = arith.cmpi eq, %12, %13 : vector<16x16xi32>
    %15 = vector.extract_strided_slice %9 {offsets = [1, 0], sizes = [15, 16], strides = [1, 1]} : vector<16x16xf32> to vector<15x16xf32>
    %16 = vector.extract_strided_slice %9 {offsets = [0, 0], sizes = [1, 16], strides = [1, 1]} : vector<16x16xf32> to vector<1x16xf32>
    %17 = tpu.concatenate %15, %16 in 0 : vector<15x16xf32>, vector<1x16xf32> -> vector<16x16xf32>
    %18 = vector.extract_strided_slice %9 {offsets = [15, 0], sizes = [1, 16], strides = [1, 1]} : vector<16x16xf32> to vector<1x16xf32>
    %19 = vector.extract_strided_slice %9 {offsets = [0, 0], sizes = [15, 16], strides = [1, 1]} : vector<16x16xf32> to vector<15x16xf32>
    %20 = tpu.concatenate %18, %19 in 0 : vector<1x16xf32>, vector<15x16xf32> -> vector<16x16xf32>
    %21 = arith.select %14, %17, %20 : vector<16x16xi1>, vector<16x16xf32>
    %c0_10 = arith.constant 0 : index
    %c0_11 = arith.constant 0 : index
    %22 = vector.load %arg4[%c0_10, %c0_11] : memref<16x16xbf16, #tpu.memory_space<vmem>>, vector<16x16xbf16>
    %23 = arith.extf %22 : vector<16x16xbf16> to vector<16x16xf32>
    %24 = arith.mulf %9, %23 : vector<16x16xf32>
    %c0_12 = arith.constant 0 : index
    %c0_13 = arith.constant 0 : index
    %25 = vector.load %arg5[%c0_12, %c0_13] : memref<16x16xbf16, #tpu.memory_space<vmem>>, vector<16x16xbf16>
    %26 = arith.extf %25 : vector<16x16xbf16> to vector<16x16xf32>
    %27 = arith.mulf %21, %26 : vector<16x16xf32>
    %28 = arith.addf %24, %27 : vector<16x16xf32>
    %29 = arith.truncf %28 : vector<16x16xf32> to vector<16x16xbf16>
    %c0_14 = arith.constant 0 : index
    %c0_15 = arith.constant 0 : index
    %c0_16 = arith.constant 0 : index
    %30 = vector.load %arg6[%c0_14, %c0_15, %c0_16] : memref<1x16x16xbf16, #tpu.memory_space<vmem>>, vector<1x16x16xbf16>
    %31 = vector.shape_cast %30 : vector<1x16x16xbf16> to vector<16x16xbf16>
    %32 = vector.shape_cast %29 : vector<16x16xbf16> to vector<1x16x16xbf16>
    tpu.vector_store %arg6[%c0_14, %c0_15, %c0_16], %32 {strides = array<i32>} : memref<1x16x16xbf16, #tpu.memory_space<vmem>>, vector<1x16x16xbf16>,
    return
  }
  func.func @transform_0(%arg0: i32) -> (i32, i32, i32) {
    %c0_i32 = arith.constant 0 : i32
    %c0_i32_0 = arith.constant 0 : i32
    %c0_i32_1 = arith.constant 0 : i32
    return %arg0, %c0_i32, %c0_i32_0 : i32, i32, i32
  }
  func.func @transform_1(%arg0: i32) -> (i32, i32) {
    %c0_i32 = arith.constant 0 : i32
    %c0_i32_0 = arith.constant 0 : i32
    %c0_i32_1 = arith.constant 0 : i32
    return %c0_i32, %c0_i32_0 : i32, i32
  }
  func.func @transform_2(%arg0: i32) -> (i32, i32) {
    %c0_i32 = arith.constant 0 : i32
    %c0_i32_0 = arith.constant 0 : i32
    %c0_i32_1 = arith.constant 0 : i32
    return %c0_i32, %c0_i32_0 : i32, i32
  }
  func.func @transform_3(%arg0: i32) -> (i32, i32) {
    %c0_i32 = arith.constant 0 : i32
    %c0_i32_0 = arith.constant 0 : i32
    %c0_i32_1 = arith.constant 0 : i32
    return %c0_i32, %c0_i32_0 : i32, i32
  }
  func.func @transform_4(%arg0: i32) -> (i32, i32) {
    %c0_i32 = arith.constant 0 : i32
    %c0_i32_0 = arith.constant 0 : i32
    %c0_i32_1 = arith.constant 0 : i32
    return %c0_i32, %c0_i32_0 : i32, i32
  }
  func.func @transform_5(%arg0: i32) -> (i32, i32, i32) {
    %c0_i32 = arith.constant 0 : i32
    %c0_i32_0 = arith.constant 0 : i32
    %c0_i32_1 = arith.constant 0 : i32
    return %arg0, %c0_i32, %c0_i32_0 : i32, i32, i32
  }
  func.func @transform_6(%arg0: i32) -> (i32, i32, i32) {
    %c0_i32 = arith.constant 0 : i32
    %c0_i32_0 = arith.constant 0 : i32
    %c0_i32_1 = arith.constant 0 : i32
    return %arg0, %c0_i32, %c0_i32_0 : i32, i32, i32
  }
}

</mosaic_0001>

<llo_original>
// kernel: tpu_custom_call.1
$region0: #{tpu_custom_call.1}
  #allocation0 [shape = 'u32[]', space=smem, size = 0x4, offset = 0x4, fixed_abs, tag = 'smem constant byte address 0x4 - core index']
  #allocation1 [shape = 'u32[144,128]{1,0:T(1,128)}', space=vmem, size = 0x12000, scoped, tag = 'internal scratch']
  %s0 = inlined_call_operand.vmem [shape: bf16[2,16,32], index: 0, kind: input, shape index: {}]
  %s1 = inlined_call_operand.vmem [shape: bf16[16,32], index: 1, kind: input, shape index: {}]
  %s2 = inlined_call_operand.vmem [shape: bf16[32,16], index: 2, kind: input, shape index: {}]
  %s3 = inlined_call_operand.vmem [shape: bf16[16,16], index: 3, kind: input, shape index: {}]
  %s4 = inlined_call_operand.hbm [shape: bf16[16,16], index: 4, kind: input, shape index: {}]
  %s5 = inlined_call_operand.hbm [shape: bf16[2,16,16], index: 5, kind: output, shape index: {0}]
  %s6 = inlined_call_operand.hbm [shape: bf16[2,16,16], index: 6, kind: output, shape index: {1}]
  %7 = xla_tuple %s5, %s6
  %s8 = sld [smem:[#allocation0]]
  $region65: #{tpu_custom_call.1} parent=0
    _
  %s10 = ssub.s32 1, %s8
  %s11 = scalar_select 0, %s10, %s8
  $region1: #{tpu_custom_call.1} parent=0
    #allocation2 [shape = 'u8[4096]{0}', space=vmem, size = 0x1000, scoped, tag = 'input window, operand 4, single buffered']
    #allocation3 [shape = 's32[2]{0}', space=sflag, size = 0x8, scoped, tag = 'scoped memory for tpu_custom_call.1']
    #allocation4 [shape = 's32[2]{0}', space=sflag, size = 0x8, scoped, tag = 'scoped memory for tpu_custom_call.1']
    #allocation5 [shape = 'u8[8192]{0}', space=vmem, size = 0x2000, scoped, tag = 'output window, operand 0']
    #allocation6 [shape = 'u8[8192]{0}', space=vmem, size = 0x2000, scoped, tag = 'output window, operand 1']
    #allocation7 [shape = 's32[2]{0}', space=sflag, size = 0x8, scoped, tag = 'scoped memory for tpu_custom_call.1']
    %12 = vsyncpa [#allocation3], 0
    %13 = vsyncpa [#allocation4], 0
    %s14 = scalar_lea.sflag [#allocation4], 1
    %15 = vsyncpa %s14, 0
    %16 = vsyncpa [#allocation7], 0
    %s17 = scalar_lea.sflag [#allocation7], 1
    %18 = vsyncpa %s17, 0
    loop: start=0, step=1, limit=4
    $region2: #{tpu_custom_call.1} parent=1 // loop_pre_header
      _
    $region3: #{tpu_custom_call.1} parent=1 // loop_header
      %s20 = sphi 0, %s24
      %p21 = scmp.ge.s32.totalorder %s20, 4
      %s30 = sphi 0, %s32
      %s33 = sphi 0, %s30
      %s34 = sphi 0, %s33
      %s50 = sphi 0, %s34
      %s54 = sphi 0, %s54
      %s56 = sphi 0, %s54
      %s57 = sphi 0, %s56
      %s71 = sphi 0, %s57
      %s75 = sphi 0, %s75
      %s77 = sphi 0, %s75
      %s78 = sphi 0, %s77
      %s92 = sphi 0, %s78
      %s96 = sphi 0, %s96
      %s98 = sphi 0, %s96
      %s99 = sphi 0, %s98
      %s113 = sphi 0, %s99
      %s117 = sphi 0, %s117
      %s119 = sphi 0, %s117
      %s120 = sphi 0, %s119
      %s134 = sphi 0, %s120
      %s140 = sphi 0, %s142
      %s143 = sphi 0, %s140
      %s144 = sphi 0, %s143
      %s160 = sphi 0, %s144
      %s166 = sphi 0, %s168
      %s169 = sphi 0, %s166
      %s170 = sphi 0, %s169
      %s186 = sphi 0, %s170
    $region4: #{tpu_custom_call.1} parent=1 // loop_header_branch
      %23 = sbr.rel (%p21) target = $region8
    $region5: #{tpu_custom_call.1} parent=1 // loop_body
      %s25 = ssub.s32 %s20, 1
      %s26 = ssub.s32 %s20, 2
      %s27 = sadd.s32 %s20, 1
      %s28 = ssub.s32 %s20, %s27
      %p29 = scmp.eq.s32.totalorder %s28, 0
      %s31 = sadd.s32 %s30, 1
      %s32 = scalar_select %p29, %s30, %s31
      %p35 = pneg %p29
      %p36 = scmp.eq.s32.totalorder %s20, 1
      %p37 = por %p35, %p36
      %p38 = scmp.ne.s32.totalorder %s30, %s33
      %p39 = scmp.eq.s32.totalorder %s20, 0
      %p40 = por %p38, %p39
      %p41 = scmp.ne.s32.totalorder %s30, %s33
      %p42 = scmp.eq.s32.totalorder %s25, 1
      %p43 = por %p41, %p42
      %p44 = scmp.ne.s32.totalorder %s33, %s34
      %p45 = scmp.eq.s32.totalorder %s25, 0
      %p46 = por %p44, %p45
      %p47 = scmp.ne.s32.totalorder %s33, %s34
      %p48 = scmp.eq.s32.totalorder %s26, 1
      %p49 = por %p47, %p48
      %p51 = scmp.ne.s32.totalorder %s34, %s50
      %p52 = scmp.eq.s32.totalorder %s26, 0
      %p53 = por %p51, %p52
      %s55 = sadd.s32 %s54, 1
      %p58 = scmp.eq.s32.totalorder %s20, 1
      %p59 = scmp.ne.s32.totalorder %s54, %s56
      %p60 = scmp.eq.s32.totalorder %s20, 0
      %p61 = por %p59, %p60
      %p62 = scmp.ne.s32.totalorder %s54, %s56
      %p63 = scmp.eq.s32.totalorder %s25, 1
      %p64 = por %p62, %p63
      %p65 = scmp.ne.s32.totalorder %s56, %s57
      %p66 = scmp.eq.s32.totalorder %s25, 0
      %p67 = por %p65, %p66
      %p68 = scmp.ne.s32.totalorder %s56, %s57
      %p69 = scmp.eq.s32.totalorder %s26, 1
      %p70 = por %p68, %p69
      %p72 = scmp.ne.s32.totalorder %s57, %s71
      %p73 = scmp.eq.s32.totalorder %s26, 0
      %p74 = por %p72, %p73
      %s76 = sadd.s32 %s75, 1
      %p79 = scmp.eq.s32.totalorder %s20, 1
      %p80 = scmp.ne.s32.totalorder %s75, %s77
      %p81 = scmp.eq.s32.totalorder %s20, 0
      %p82 = por %p80, %p81
      %p83 = scmp.ne.s32.totalorder %s75, %s77
      %p84 = scmp.eq.s32.totalorder %s25, 1
      %p85 = por %p83, %p84
      %p86 = scmp.ne.s32.totalorder %s77, %s78
      %p87 = scmp.eq.s32.totalorder %s25, 0
      %p88 = por %p86, %p87
      %p89 = scmp.ne.s32.totalorder %s77, %s78
      %p90 = scmp.eq.s32.totalorder %s26, 1
      %p91 = por %p89, %p90
      %p93 = scmp.ne.s32.totalorder %s78, %s92
      %p94 = scmp.eq.s32.totalorder %s26, 0
      %p95 = por %p93, %p94
      %s97 = sadd.s32 %s96, 1
      %p100 = scmp.eq.s32.totalorder %s20, 1
      %p101 = scmp.ne.s32.totalorder %s96, %s98
      %p102 = scmp.eq.s32.totalorder %s20, 0
      %p103 = por %p101, %p102
      %p104 = scmp.ne.s32.totalorder %s96, %s98
      %p105 = scmp.eq.s32.totalorder %s25, 1
      %p106 = por %p104, %p105
      %p107 = scmp.ne.s32.totalorder %s98, %s99
      %p108 = scmp.eq.s32.totalorder %s25, 0
      %p109 = por %p107, %p108
      %p110 = scmp.ne.s32.totalorder %s98, %s99
      %p111 = scmp.eq.s32.totalorder %s26, 1
      %p112 = por %p110, %p111
      %p114 = scmp.ne.s32.totalorder %s99, %s113
      %p115 = scmp.eq.s32.totalorder %s26, 0
      %p116 = por %p114, %p115
      %s118 = sadd.s32 %s117, 1
      %p121 = scmp.eq.s32.totalorder %s20, 1
      %p122 = scmp.ne.s32.totalorder %s117, %s119
      %p123 = scmp.eq.s32.totalorder %s20, 0
      %p124 = por %p122, %p123
      %p125 = scmp.ne.s32.totalorder %s117, %s119
      %p126 = scmp.eq.s32.totalorder %s25, 1
      %p127 = por %p125, %p126
      %p128 = scmp.ne.s32.totalorder %s119, %s120
      %p129 = scmp.eq.s32.totalorder %s25, 0
      %p130 = por %p128, %p129
      %p131 = scmp.ne.s32.totalorder %s119, %s120
      %p132 = scmp.eq.s32.totalorder %s26, 1
      %p133 = por %p131, %p132
      %p135 = scmp.ne.s32.totalorder %s120, %s134
      %p136 = scmp.eq.s32.totalorder %s26, 0
      %p137 = por %p135, %p136
      %s138 = ssub.s32 %s20, %s27
      %p139 = scmp.eq.s32.totalorder %s138, 0
      %s141 = sadd.s32 %s140, 1
      %s142 = scalar_select %p139, %s140, %s141
      %p145 = pneg %p139
      %p146 = scmp.eq.s32.totalorder %s20, 1
      %p147 = por %p145, %p146
      %p148 = scmp.ne.s32.totalorder %s140, %s143
      %p149 = scmp.eq.s32.totalorder %s20, 0
      %p150 = por %p148, %p149
      %p151 = scmp.ne.s32.totalorder %s140, %s143
      %p152 = scmp.eq.s32.totalorder %s25, 1
      %p153 = por %p151, %p152
      %p154 = scmp.ne.s32.totalorder %s143, %s144
      %p155 = scmp.eq.s32.totalorder %s25, 0
      %p156 = por %p154, %p155
      %p157 = scmp.ne.s32.totalorder %s143, %s144
      %p158 = scmp.eq.s32.totalorder %s26, 1
      %p159 = por %p157, %p158
      %p161 = scmp.ne.s32.totalorder %s144, %s160
      %p162 = scmp.eq.s32.totalorder %s26, 0
      %p163 = por %p161, %p162
      %s164 = ssub.s32 %s20, %s27
      %p165 = scmp.eq.s32.totalorder %s164, 0
      %s167 = sadd.s32 %s166, 1
      %s168 = scalar_select %p165, %s166, %s167
      %p171 = pneg %p165
      %p172 = scmp.eq.s32.totalorder %s20, 1
      %p173 = por %p171, %p172
      %p174 = scmp.ne.s32.totalorder %s166, %s169
      %p175 = scmp.eq.s32.totalorder %s20, 0
      %p176 = por %p174, %p175
      %p177 = scmp.ne.s32.totalorder %s166, %s169
      %p178 = scmp.eq.s32.totalorder %s25, 1
      %p179 = por %p177, %p178
      %p180 = scmp.ne.s32.totalorder %s169, %s170
      %p181 = scmp.eq.s32.totalorder %s25, 0
      %p182 = por %p180, %p181
      %p183 = scmp.ne.s32.totalorder %s169, %s170
      %p184 = scmp.eq.s32.totalorder %s26, 1
      %p185 = por %p183, %p184
      %p187 = scmp.ne.s32.totalorder %s170, %s186
      %p188 = scmp.eq.s32.totalorder %s26, 0
      %p189 = por %p187, %p188
      %p190 = scmp.le.s32.totalorder 1, %s20
      %p191 = scmp.lt.s32.totalorder %s20, 3
      %p192 = pnand %p190, %p191
      %p193 = pneg %p192
      // Predicated region
      $region9: #{tpu_custom_call.1} parent=5 // pred_check
        _
      $region10: #{tpu_custom_call.1} parent=5 // pred_check_branch
        %195 = sbr.rel (%p192) target = $region12
      $region11: #{tpu_custom_call.1} parent=5 // pred_region
        %s196 = ssub.s32 %s20, 1
        // Predicated region
        $region13: #{tpu_custom_call.1} parent=11 // pred_check
          %p197 = pneg %p67
        $region14: #{tpu_custom_call.1} parent=11 // pred_check_branch
          %199 = sbr.rel (%p197) target = $region16
        $region15: #{tpu_custom_call.1} parent=11 // pred_region
          _
        $region16: #{tpu_custom_call.1} parent=11 // pred_fallthru
          _
        // Predicated region
        $region17: #{tpu_custom_call.1} parent=11 // pred_check
          %p200 = pneg %p88
        $region18: #{tpu_custom_call.1} parent=11 // pred_check_branch
          %202 = sbr.rel (%p200) target = $region20
        $region19: #{tpu_custom_call.1} parent=11 // pred_region
          _
        $region20: #{tpu_custom_call.1} parent=11 // pred_fallthru
          _
        // Predicated region
        $region21: #{tpu_custom_call.1} parent=11 // pred_check
          %p203 = pneg %p109
        $region22: #{tpu_custom_call.1} parent=11 // pred_check_branch
          %205 = sbr.rel (%p203) target = $region24
        $region23: #{tpu_custom_call.1} parent=11 // pred_region
          _
        $region24: #{tpu_custom_call.1} parent=11 // pred_fallthru
          _
        // Predicated region
        $region25: #{tpu_custom_call.1} parent=11 // pred_check
          %p206 = pneg %p130
        $region26: #{tpu_custom_call.1} parent=11 // pred_check_branch
          %208 = sbr.rel (%p206) target = $region28
        $region27: #{tpu_custom_call.1} parent=11 // pred_region
          %s210 = ssub.s32 128, 128
          %211 = vsyncadd [#allocation3], %s210
          %s212 = sshll.u32 [#allocation2], 4
          %s213 = int_to_ptr.vmem [resolvable:$true] %s212
          %218 = dma.hbm_to_vmem [thread:$0]  %s4, 128, %s213, [#allocation3], 64, 64, 4
        $region28: #{tpu_custom_call.1} parent=11 // pred_fallthru
          _
      $region12: #{tpu_custom_call.1} parent=5 // pred_fallthru
        _
      %p219 = scmp.lt.s32.totalorder %s20, 2
      // Predicated region
      $region29: #{tpu_custom_call.1} parent=5 // pred_check
        %p220 = pneg %p219
      $region30: #{tpu_custom_call.1} parent=5 // pred_check_branch
        %222 = sbr.rel (%p220) target = $region32
      $region31: #{tpu_custom_call.1} parent=5 // pred_region
        // Predicated region
        $region33: #{tpu_custom_call.1} parent=31 // pred_check
          %p223 = pneg %p40
        $region34: #{tpu_custom_call.1} parent=31 // pred_check_branch
          %225 = sbr.rel (%p223) target = $region36
        $region35: #{tpu_custom_call.1} parent=31 // pred_region
          %p226 = scmp.lt.s32.totalorder %s20, 1
          %s227 = scalar_select %p226, %s20, 1
          %s228 = smul.addr %s227, 2
          %s229 = smul.addr %s228, 4
          %s230 = scalar_lea.vmem %s0, %s229
        $region36: #{tpu_custom_call.1} parent=31 // pred_fallthru
          _
      $region32: #{tpu_custom_call.1} parent=5 // pred_fallthru
        _
      %p231 = scmp.le.s32.totalorder 1, %s20
      %p232 = scmp.lt.s32.totalorder %s20, 3
      %p233 = pnand %p231, %p232
      %p234 = pneg %p233
      // Predicated region
      $region37: #{tpu_custom_call.1} parent=5 // pred_check
        _
      $region38: #{tpu_custom_call.1} parent=5 // pred_check_branch
        %236 = sbr.rel (%p233) target = $region40
      $region39: #{tpu_custom_call.1} parent=5 // pred_region
        %s237 = ssub.s32 %s20, 1
        // Predicated region
        $region41: #{tpu_custom_call.1} parent=39 // pred_check
          %p238 = pneg %p130
        $region42: #{tpu_custom_call.1} parent=39 // pred_check_branch
          %240 = sbr.rel (%p238) target = $region44
        $region43: #{tpu_custom_call.1} parent=39 // pred_region
          %241 = dma.done [#allocation3], 128
        $region44: #{tpu_custom_call.1} parent=39 // pred_fallthru
          _
        %p242 = scmp.lt.s32.totalorder %s25, 1
        %s243 = scalar_select %p242, %s25, 1
        %s244 = smul.addr %s243, 2
        %s245 = smul.addr %s244, 4
        %s246 = scalar_lea.vmem %s0, %s245
        %p247 = pneg %p46
        %p248 = pneg %p43
        %p249 = pneg %p67
        %p250 = pneg %p64
        %p251 = pneg %p88
        %p252 = pneg %p85
        %p253 = pneg %p109
        %p254 = pneg %p106
        %p255 = pneg %p130
        %p256 = pneg %p127
        %p257 = pneg %p156
        %p258 = pneg %p153
        %s259 = sand.u32 %s143, 1
        %s260 = scalar_lea.sflag [#allocation4], %s259
        %s261 = sand.u32 %s143, 1
        %s262 = smul.addr %s261, 8
        %s263 = scalar_lea.vmem [#allocation5], %s262
        %p264 = pneg %p182
        %p265 = pneg %p179
        %s266 = sand.u32 %s169, 1
        %s267 = scalar_lea.sflag [#allocation7], %s266
        %s268 = sand.u32 %s169, 1
        %s269 = smul.addr %s268, 8
        %s270 = scalar_lea.vmem [#allocation6], %s269
        %p271 = scmp.lt.s32.totalorder %s25, 1
        %s272 = scalar_select %p271, %s25, 1
        %s273 = smul.addr %s272, 2
        %s274 = smul.addr %s273, 4
        %s275 = scalar_lea.vmem %s0, %s274
        %v277 = vld [vmem:[%s275] sm:$0xf]
        %v278 = vld [vmem:[%s275 + $0x4] sm:$0xf]
        %v279 = vld [vmem:[%s2] sm:$0xf]
        %v280 = vld [vmem:[%s2 + $0x4] sm:$0xf]
        %v281 = vld [vmem:[%s2 + $0x8] sm:$0xf]
        %v282 = vld [vmem:[%s2 + $0xc] sm:$0xf]
        %v285 = vunpack.c.l.b16 %v277
        %v286 = vunpack.c.l.b16 %v278
        %v287 = vpack.c.b16 %v286, %v285
        %v292 = vunpack.c.l.b16 %v279
        %v293 = vunpack.c.l.b16 %v280
        %v294 = vunpack.c.l.b16 %v281
        %v295 = vunpack.c.l.b16 %v282
        %v296 = vpack.c.b16 %v293, %v292
        %v297 = vpack.c.b16 %v295, %v294
        %vm300 = vcmask 261120
        %v302 = vsel %vm300, %v287, 0
        %304 = vmatprep.subr.bf16.mxu0 0
        %305 = vmatpush1.bf16.msra.mxu0 %v296
        %306 = vmatprep.subr.bf16.mxu0 0
        %307 = vmatpush1.bf16.msra.mxu0 %v297
        %308 = vmatprep.subr.bf16.mxu0 0
        %309 = vmatpush1.bf16.msra.mxu0 0
        %310 = vmatprep.subr.bf16.mxu0 0
        %311 = vmatpush1.bf16.msra.mxu0 0
        %312 = vmatprep.subr.bf16.mxu0 0
        %313 = vmatpush1.bf16.msra.mxu0 0
        %314 = vmatprep.subr.bf16.mxu0 0
        %315 = vmatpush1.bf16.msra.mxu0 0
        %316 = vmatprep.subr.bf16.mxu0 0
        %317 = vmatpush1.bf16.msra.mxu0 0
        %318 = vmatprep.subr.bf16.mxu0 0
        %319 = vmatpush1.bf16.msra.mxu0 0
        %320 = vmatprep.subr.bf16.mxu0 0
        %321 = vmatpush1.bf16.msra.mxu0 0
        %322 = vmatprep.subr.bf16.mxu0 0
        %323 = vmatpush1.bf16.msra.mxu0 0
        %324 = vmatprep.subr.bf16.mxu0 0
        %325 = vmatpush1.bf16.msra.mxu0 0
        %326 = vmatprep.subr.bf16.mxu0 0
        %327 = vmatpush1.bf16.msra.mxu0 0
        %328 = vmatprep.subr.bf16.mxu0 0
        %329 = vmatpush1.bf16.msra.mxu0 0
        %330 = vmatprep.subr.bf16.mxu0 0
        %331 = vmatpush1.bf16.msra.mxu0 0
        %332 = vmatprep.subr.bf16.mxu0 0
        %333 = vmatpush1.bf16.msra.mxu0 0
        %334 = vmatprep.subr.bf16.mxu0 0
        %335 = vmatpush1.bf16.msra.mxu0 0
        %336 = vmatprep.mubr.bf16.mxu0 0
        %337 = vmatmul.mubr.bf16.gmra.mrb[0].mxu0 %v302
        %v338 = vpop.f32.mrb[0].mxu0
        %v339 = vadd.f32 0.0, %v338
        %v340 = vpop.f32.mrb[0].mxu0
        %v341 = vpop.f32.mrb[0].mxu0
        %v342 = vadd.f32 0.0, %v341
        %v343 = vpop.f32.mrb[0].mxu0
        %344 = vdwg.mxu0
        %v345 = vpack.c.bf16 %v342, %v339
        %v347 = vunpack.c.l.b16 %v345
        %v348 = vunpack.c.h.b16 %v345
        %v349 = vpack.c.b16 %v347, %v347
        %v350 = vpack.c.b16 %v348, %v348
        %vm353 = vcmask 125952
        %354 = vst.msk [vmem:[%s270] sm:$0xf] %vm353, %v349
        %355 = vst.msk [vmem:[%s270 + $0x4] sm:$0xf] %vm353, %v350
        %v356 = vld [vmem:[%s1] sm:$0xf]
        %v357 = vld [vmem:[%s1 + $0x4] sm:$0xf]
        %v360 = vunpack.c.l.b16 %v356
        %v361 = vunpack.c.l.b16 %v357
        %v362 = vpack.c.b16 %v361, %v360
        %v364 = vsel %vm300, %v362, 0
        %366 = vmatprep.subr.bf16.mxu0 0
        %367 = vmatpush1.bf16.xpose.msra.mxu0 %v302
        %368 = vmatprep.subr.bf16.mxu0 0
        %369 = vmatpush1.bf16.xpose.msra.mxu0 0
        %370 = vmatprep.subr.bf16.mxu0 0
        %371 = vmatpush1.bf16.xpose.msra.mxu0 0
        %372 = vmatprep.subr.bf16.mxu0 0
        %373 = vmatpush1.bf16.xpose.msra.mxu0 0
        %374 = vmatprep.subr.bf16.mxu0 0
        %375 = vmatpush1.bf16.xpose.msra.mxu0 0
        %376 = vmatprep.subr.bf16.mxu0 0
        %377 = vmatpush1.bf16.xpose.msra.mxu0 0
        %378 = vmatprep.subr.bf16.mxu0 0
        %379 = vmatpush1.bf16.xpose.msra.mxu0 0
        %380 = vmatprep.subr.bf16.mxu0 0
        %381 = vmatpush1.bf16.xpose.msra.mxu0 0
        %382 = vmatprep.subr.bf16.mxu0 0
        %383 = vmatpush1.bf16.xpose.msra.mxu0 0
        %384 = vmatprep.subr.bf16.mxu0 0
        %385 = vmatpush1.bf16.xpose.msra.mxu0 0
        %386 = vmatprep.subr.bf16.mxu0 0
        %387 = vmatpush1.bf16.xpose.msra.mxu0 0
        %388 = vmatprep.subr.bf16.mxu0 0
        %389 = vmatpush1.bf16.xpose.msra.mxu0 0
        %390 = vmatprep.subr.bf16.mxu0 0
        %391 = vmatpush1.bf16.xpose.msra.mxu0 0
        %392 = vmatprep.subr.bf16.mxu0 0
        %393 = vmatpush1.bf16.xpose.msra.mxu0 0
        %394 = vmatprep.subr.bf16.mxu0 0
        %395 = vmatpush1.bf16.xpose.msra.mxu0 0
        %396 = vmatprep.subr.bf16.mxu0 0
        %397 = vmatpush1.bf16.xpose.msra.mxu0 0
        %398 = vmatprep.mubr.bf16.mxu0 0
        %399 = vmatmul.mubr.bf16.gmra.mrb[0].mxu0 %v364
        %v400 = vpop.f32.mrb[0].mxu0
        %v401 = vadd.f32 0.0, %v400
        %v402 = vpop.f32.mrb[0].mxu0
        %v403 = vpop.f32.mrb[0].mxu0
        %v404 = vadd.f32 0.0, %v403
        %v405 = vpop.f32.mrb[0].mxu0
        %406 = vdwg.mxu0
        %v407 = vlaneseq
        %v408 = vshrl.u32 %v407, 7
        %v409 = vadd.s32 %v408, 8
        %v410 = vand.u32 %v408, 1
        %v411 = vand.u32 %v409, 1
        %vm412 = vcmp.eq.s32.totalorder %v410, 0
        %vm413 = vcmp.eq.s32.totalorder %v411, 0
        %vm416 = vcmask 1046528
        %v417 = vrot.slane %v401, 1
        %v418 = vrot.slane %v404, 1
        %v419 = vsel %vm416, %v417, %v418
        %v423 = vsel %vm416, %v418, %v417
        %v424 = vrot.slane %v404, 7
        %vm426 = vcmask 1040384
        %v427 = vrot.slane %v401, 7
        %v428 = vsel %vm426, %v427, %v424
        %v431 = vsel %vm426, %v424, %v427
        %v432 = vsel %vm412, %v419, %v431
        %v433 = vsel %vm413, %v423, %v428
        %v434 = vld [vmem:[%s3] sm:$0xf]
        %v435 = vld [vmem:[%s3 + $0x4] sm:$0xf]
        %v436 = vunpack.c.l.bf16 %v434
        %v437 = vunpack.c.l.bf16 %v435
        %v438 = vmul.f32 %v401, %v436
        %v439 = vmul.f32 %v404, %v437
        %v440 = vld [vmem:[#allocation2] sm:$0xf]
        %v441 = vld [vmem:[#allocation2 + $0x4] sm:$0xf]
        %v442 = vunpack.c.l.bf16 %v440
        %v443 = vunpack.c.l.bf16 %v441
        %v444 = vmul.f32 %v432, %v442
        %v445 = vmul.f32 %v433, %v443
        %v446 = vadd.f32 %v438, %v444
        %v447 = vadd.f32 %v439, %v445
        %v448 = vpack.c.bf16 %v447, %v446
        %v450 = vunpack.c.l.b16 %v448
        %v451 = vunpack.c.h.b16 %v448
        %v452 = vpack.c.b16 %v450, %v450
        %v453 = vpack.c.b16 %v451, %v451
        %456 = vst.msk [vmem:[%s263] sm:$0xf] %vm353, %v452
        %457 = vst.msk [vmem:[%s263 + $0x4] sm:$0xf] %vm353, %v453
        %s458 = sand.u32 %s143, 1
        %s459 = scalar_lea.sflag [#allocation4], %s458
        %s460 = sand.u32 %s143, 1
        %s461 = smul.addr %s460, 8
        %s462 = scalar_lea.vmem [#allocation5], %s461
        %s463 = sand.u32 %s169, 1
        %s464 = scalar_lea.sflag [#allocation7], %s463
        %s465 = sand.u32 %s169, 1
        %s466 = smul.addr %s465, 8
        %s467 = scalar_lea.vmem [#allocation6], %s466
        // Predicated region
        $region45: #{tpu_custom_call.1} parent=39 // pred_check
          %p468 = pneg %p153
        $region46: #{tpu_custom_call.1} parent=39 // pred_check_branch
          %470 = sbr.rel (%p468) target = $region48
        $region47: #{tpu_custom_call.1} parent=39 // pred_region
          %s472 = ssub.s32 128, 128
          %473 = vsyncadd %s459, %s472
          %s474 = smul.addr %s25, 2
          %s475 = smul.addr %s474, 64
          %s476 = scalar_lea.hbm %s5, %s475
          %s477 = sshll.u32 %s462, 4
          %s478 = int_to_ptr.vmem [resolvable:$true] %s477
          %483 = dma.vmem_to_hbm [thread:$0]  %s478, 128, %s476, %s459, 64, 64, 4
        $region48: #{tpu_custom_call.1} parent=39 // pred_fallthru
          _
        // Predicated region
        $region49: #{tpu_custom_call.1} parent=39 // pred_check
          %p484 = pneg %p179
        $region50: #{tpu_custom_call.1} parent=39 // pred_check_branch
          %486 = sbr.rel (%p484) target = $region52
        $region51: #{tpu_custom_call.1} parent=39 // pred_region
          %s488 = ssub.s32 128, 128
          %489 = vsyncadd %s464, %s488
          %s490 = smul.addr %s25, 2
          %s491 = smul.addr %s490, 64
          %s492 = scalar_lea.hbm %s6, %s491
          %s493 = sshll.u32 %s467, 4
          %s494 = int_to_ptr.vmem [resolvable:$true] %s493
          %499 = dma.vmem_to_hbm [thread:$0]  %s494, 128, %s492, %s464, 64, 64, 4
        $region52: #{tpu_custom_call.1} parent=39 // pred_fallthru
          _
      $region40: #{tpu_custom_call.1} parent=5 // pred_fallthru
        _
      %p500 = scmp.le.s32.totalorder 2, %s20
      // Predicated region
      $region53: #{tpu_custom_call.1} parent=5 // pred_check
        %p501 = pneg %p500
      $region54: #{tpu_custom_call.1} parent=5 // pred_check_branch
        %503 = sbr.rel (%p501) target = $region56
      $region55: #{tpu_custom_call.1} parent=5 // pred_region
        %s504 = ssub.s32 %s20, 2
        // Predicated region
        $region57: #{tpu_custom_call.1} parent=55 // pred_check
          %p505 = pneg %p159
        $region58: #{tpu_custom_call.1} parent=55 // pred_check_branch
          %507 = sbr.rel (%p505) target = $region60
        $region59: #{tpu_custom_call.1} parent=55 // pred_region
          %s508 = sand.u32 %s144, 1
          %s509 = scalar_lea.sflag [#allocation4], %s508
          %s510 = sand.u32 %s144, 1
          %s511 = smul.addr %s510, 8
          %s512 = scalar_lea.vmem [#allocation5], %s511
          %513 = dma.done %s509, 128
        $region60: #{tpu_custom_call.1} parent=55 // pred_fallthru
          _
        // Predicated region
        $region61: #{tpu_custom_call.1} parent=55 // pred_check
          %p514 = pneg %p185
        $region62: #{tpu_custom_call.1} parent=55 // pred_check_branch
          %516 = sbr.rel (%p514) target = $region64
        $region63: #{tpu_custom_call.1} parent=55 // pred_region
          %s517 = sand.u32 %s170, 1
          %s518 = scalar_lea.sflag [#allocation7], %s517
          %s519 = sand.u32 %s170, 1
          %s520 = smul.addr %s519, 8
          %s521 = scalar_lea.vmem [#allocation6], %s520
          %522 = dma.done %s518, 128
        $region64: #{tpu_custom_call.1} parent=55 // pred_fallthru
          _
      $region56: #{tpu_custom_call.1} parent=5 // pred_fallthru
        _
    $region6: #{tpu_custom_call.1} parent=1 // loop_footer
      %s24 = sadd.s32 1, %s20
    $region7: #{tpu_custom_call.1} parent=1 // loop_footer_branch
      %19 = sbr.rel target = $region3
    $region8: #{tpu_custom_call.1} parent=1 // loop_exit
      _
    %523 = vsyncpa [#allocation3], 1
    %s524 = scalar_lea.sflag [#allocation3], 1
    %525 = vsyncpa %s524, 1
    %526 = vsyncpa [#allocation4], 1
    %s527 = scalar_lea.sflag [#allocation4], 1
    %528 = vsyncpa %s527, 1
    %529 = vsyncpa [#allocation7], 1
    %s530 = scalar_lea.sflag [#allocation7], 1
    %531 = vsyncpa %s530, 1

</llo_original>
